<compile_context>
chip_gen: v6e
topology: v6e:2x2x1
jax: 0.10.0
libtpu: 0.0.40
codegen_flags: <defaults>
</compile_context>

<pallas_src>
import functools

import jax
import jax.numpy as jnp
from jax.experimental import pallas as pl
from jax.experimental.pallas import tpu as pltpu


def _classifier_end_kernel(x_ref, wt_ref, b_ref, o_ref, *, use_softmax: bool):
    # x_ref : (1, Cin, tile_p)  pixels on lanes
    # wt_ref: (C, Cin)          fused weight, transposed
    # b_ref : (C, 1)            fused bias (broadcast over lanes)
    # o_ref : (1, C, tile_p)
    x = x_ref[0]                                                        # (Cin, tile_p)
    h = jnp.dot(wt_ref[...], x,
                preferred_element_type=jnp.float32) + b_ref[...]       # (C, tile_p)
    if use_softmax:
        # softmax over the channel (sublane) axis: only C rows to reduce.
        m = jnp.max(h, axis=0, keepdims=True)
        e = jnp.exp(h - m)
        s = jnp.sum(e, axis=0, keepdims=True)
        # exact normalization (kernel is HBM-bound; exact divide is free and keeps
        # per-pixel probabilities summing to 1 to f32 precision).
        o_ref[0] = e / s
    else:
        o_ref[0] = 1.0 / (1.0 + jnp.exp(-h))


def _pick_tile(hw_pad128: int, tile_p: int) -> int:
    """Largest multiple of 128 that divides hw_pad128 and is <= tile_p."""
    k = hw_pad128 // 128
    m = min(tile_p // 128, k)
    while k % m != 0:
        m -= 1
    return m * 128


@functools.partial(jax.jit, static_argnames=("num_classes", "tile_p"))
def classifier_end(x_nchw, params, *, num_classes: int, tile_p: int = 16384):
    """x_nchw: (N, 21, H, W) float32. Returns (N, num_classes, H, W)."""
    w1, b1, w2, b2, w3, b3, w4, b4 = params
    N, Cin, H, W = x_nchw.shape
    C = num_classes
    HW = H * W

    # --- fold the 4 affine layers into one matmul + bias (no nonlinearity between) ---
    w_fused = w1 @ w2 @ w3 @ w4                              # (Cin, C)
    b_fused = ((b1 @ w2 + b2) @ w3 + b3) @ w4 + b4           # (1, C)
    wt = w_fused.T                                           # (C, Cin)
    bt = b_fused.T                                           # (C, 1)

    # --- native NCHW, pixels on the lane axis ---
    x_view = x_nchw.reshape(N, Cin, HW)

    assert tile_p % 128 == 0, "tile_p must be a multiple of 128"
    # Minimal 128-rounding of the pixel count (zero pad for typical image sizes),
    # then choose the tile as a divisor so no extra pad / slice HBM pass is needed.
    HW_pad = pl.cdiv(HW, 128) * 128
    tile = _pick_tile(HW_pad, tile_p)
    if tile < 2048 and HW_pad // tile > 16:
        # Pathological divisor structure (e.g. prime pixel count / 128): fall back to
        # padding up to a large-tile multiple rather than running many tiny steps.
        tile = min(tile_p, HW_pad)
        HW_pad = pl.cdiv(HW_pad, tile) * tile
    if HW_pad != HW:
        x_view = jnp.pad(x_view, ((0, 0), (0, 0), (0, HW_pad - HW)))

    kernel = functools.partial(_classifier_end_kernel, use_softmax=(C > 1))
    grid = (N, HW_pad // tile)

    out = pl.pallas_call(
        kernel,
        out_shape=jax.ShapeDtypeStruct((N, C, HW_pad), jnp.float32),
        grid_spec=pltpu.PrefetchScalarGridSpec(
            num_scalar_prefetch=0,
            grid=grid,
            in_specs=[
                pl.BlockSpec((1, Cin, tile), lambda n, p: (n, 0, p)),  # x tile
                pl.BlockSpec((C, Cin), lambda n, p: (0, 0)),           # fused W^T
                pl.BlockSpec((C, 1), lambda n, p: (0, 0)),             # fused b^T
            ],
            out_specs=pl.BlockSpec((1, C, tile), lambda n, p: (n, 0, p)),
        ),
        compiler_params=pltpu.CompilerParams(
            dimension_semantics=("parallel", "parallel"),
            # headroom for big tiles on v5e's 16 MiB default scoped-VMEM
            vmem_limit_bytes=32 * 1024 * 1024,
        ),
        cost_estimate=pl.CostEstimate(
            flops=2 * Cin * C * N * HW_pad,
            transcendentals=C * N * HW_pad,
            bytes_accessed=(Cin + C) * N * HW_pad * 4,
        ),
    )(x_view, wt, bt)

    if HW_pad != HW:
        out = out[:, :, :HW]
    return out.reshape(N, C, H, W)


def init_params(key, num_classes: int, in_channels: int = 21):
    """Deterministic PyTorch-like init: U(-1/sqrt(fan_in), 1/sqrt(fan_in)).
    Weights stored as (Cin, Cout) so layer i computes X @ W_i + b_i."""
    C = num_classes
    keys = jax.random.split(key, 8)
    params = []
    cins = [in_channels, C, C, C]
    for li in range(4):
        k = 1.0 / jnp.sqrt(jnp.asarray(cins[li], jnp.float32))
        w = jax.random.uniform(keys[2 * li], (cins[li], C),
                               minval=-k, maxval=k, dtype=jnp.float32)
        b = jax.random.uniform(keys[2 * li + 1], (1, C),
                               minval=-k, maxval=k, dtype=jnp.float32)
        params += [w, b]
    return tuple(params)


def reference(x_nchw, params, num_classes):
    """Pure-JAX unfused reference matching the PyTorch module (4 chained 1x1 convs)."""
    w1, b1, w2, b2, w3, b3, w4, b4 = params
    N, Cin, H, W = x_nchw.shape
    x = jnp.transpose(x_nchw, (0, 2, 3, 1)).reshape(-1, Cin)
    h = x @ w1 + b1
    h = h @ w2 + b2
    h = h @ w3 + b3
    h = h @ w4 + b4
    if num_classes > 1:
        h = jax.nn.softmax(h, axis=-1)
    else:
        h = jax.nn.sigmoid(h)
    return jnp.transpose(h.reshape(N, H, W, num_classes), (0, 3, 1, 2))


if __name__ == "__main__":
    num_classes = 4
    N, Cin, H, W = 2, 21, 16, 16   # 256 pixels per image

    key = jax.random.PRNGKey(0)
    kx, kp = jax.random.split(key)
    x = jax.random.normal(kx, (N, Cin, H, W), dtype=jnp.float32)
    params = init_params(kp, num_classes, Cin)

    out = classifier_end(x, params, num_classes=num_classes)
    out = jax.block_until_ready(out)

    ref = reference(x, params, num_classes)
    assert out.shape == (N, num_classes, H, W)
    # fused weights change rounding slightly vs the unfused/exact reference.
    assert jnp.allclose(out, ref, atol=1e-4, rtol=1e-4)
    # probabilities over the channel dim sum to 1 (exact normalization in-kernel)
    assert jnp.allclose(out.sum(axis=1), jnp.ones((N, H, W)), atol=1e-5)

    print("KERNEL_OK")
</pallas_src>

<mosaic_0001>
module attributes {stable_mosaic.version = 11 : i64} {
  func.func @_classifier_end_kernel(%arg0: i32, %arg1: i32, %arg2: memref<1x21x256xf32, #tpu.memory_space<vmem>>, %arg3: memref<4x21xf32, #tpu.memory_space<vmem>>, %arg4: memref<4x1xf32, #tpu.memory_space<vmem>>, %arg5: memref<1x4x256xf32, #tpu.memory_space<vmem>>) attributes {dimension_semantics = [#tpu.dimension_semantics<parallel>, #tpu.dimension_semantics<parallel>], iteration_bounds = array<i64: 2, 1>, scalar_prefetch = 0 : i64, scratch_operands = 0 : i64, tpu.core_type = #tpu.core_type<tc>, window_params = [{transform_indices = @transform_0, window_bounds = array<i64: 1, 21, 256>}, {pipeline_mode = #tpu.pipeline_mode<synchronous>, transform_indices = @transform_1, window_bounds = array<i64: 4, 21>}, {pipeline_mode = #tpu.pipeline_mode<synchronous>, transform_indices = @transform_2, window_bounds = array<i64: 4, 1>}, {transform_indices = @transform_3, window_bounds = array<i64: 1, 4, 256>}]} {
    %c0 = arith.constant 0 : index
    %c0_0 = arith.constant 0 : index
    %c0_1 = arith.constant 0 : index
    %0 = vector.load %arg2[%c0, %c0_0, %c0_1] : memref<1x21x256xf32, #tpu.memory_space<vmem>>, vector<1x21x256xf32>
    %1 = vector.shape_cast %0 : vector<1x21x256xf32> to vector<21x256xf32>
    %c0_2 = arith.constant 0 : index
    %c0_3 = arith.constant 0 : index
    %2 = vector.load %arg3[%c0_2, %c0_3] : memref<4x21xf32, #tpu.memory_space<vmem>>, vector<4x21xf32>
    %cst = arith.constant dense<0.000000e+00> : vector<4x256xf32>
    %3 = tpu.matmul %2, %1, %cst {dimension_numbers = #tpu.dot_dimension_numbers<[1], [0], [0], [1], [0, 0, 1, 1], [], []>} : vector<4x21xf32>, vector<21x256xf32>, vector<4x256xf32> -> vector<4x256xf32>
    %c0_4 = arith.constant 0 : index
    %c0_5 = arith.constant 0 : index
    %4 = vector.load %arg4[%c0_4, %c0_5] : memref<4x1xf32, #tpu.memory_space<vmem>>, vector<4x1xf32>
    %5 = vector.broadcast %4 : vector<4x1xf32> to vector<4x256xf32>
    %6 = arith.addf %3, %5 : vector<4x256xf32>
    %cst_6 = arith.constant dense<0xFF800000> : vector<256xf32>
    %7 = vector.multi_reduction <maximumf>, %6, %cst_6 [0] : vector<4x256xf32> to vector<256xf32>
    %8 = vector.shape_cast %7 : vector<256xf32> to vector<1x256xf32>
    %9 = vector.broadcast %8 : vector<1x256xf32> to vector<4x256xf32>
    %10 = arith.subf %6, %9 : vector<4x256xf32>
    %11 = math.exp %10 : vector<4x256xf32>
    %cst_7 = arith.constant dense<0.000000e+00> : vector<256xf32>
    %12 = vector.multi_reduction <add>, %11, %cst_7 [0] : vector<4x256xf32> to vector<256xf32>
    %13 = vector.shape_cast %12 : vector<256xf32> to vector<1x256xf32>
    %14 = vector.broadcast %13 : vector<1x256xf32> to vector<4x256xf32>
    %15 = arith.divf %11, %14 : vector<4x256xf32>
    %c0_8 = arith.constant 0 : index
    %c0_9 = arith.constant 0 : index
    %c0_10 = arith.constant 0 : index
    %16 = vector.load %arg5[%c0_8, %c0_9, %c0_10] : memref<1x4x256xf32, #tpu.memory_space<vmem>>, vector<1x4x256xf32>
    %17 = vector.shape_cast %16 : vector<1x4x256xf32> to vector<4x256xf32>
    %18 = vector.shape_cast %15 : vector<4x256xf32> to vector<1x4x256xf32>
    tpu.vector_store %arg5[%c0_8, %c0_9, %c0_10], %18 {strides = array<i32>} : memref<1x4x256xf32, #tpu.memory_space<vmem>>, vector<1x4x256xf32>,
    return
  }
  func.func @transform_0(%arg0: i32, %arg1: i32) -> (i32, i32, i32) {
    %c0_i32 = arith.constant 0 : i32
    %c0_i32_0 = arith.constant 0 : i32
    return %arg0, %c0_i32, %arg1 : i32, i32, i32
  }
  func.func @transform_1(%arg0: i32, %arg1: i32) -> (i32, i32) {
    %c0_i32 = arith.constant 0 : i32
    %c0_i32_0 = arith.constant 0 : i32
    %c0_i32_1 = arith.constant 0 : i32
    return %c0_i32, %c0_i32_0 : i32, i32
  }
  func.func @transform_2(%arg0: i32, %arg1: i32) -> (i32, i32) {
    %c0_i32 = arith.constant 0 : i32
    %c0_i32_0 = arith.constant 0 : i32
    %c0_i32_1 = arith.constant 0 : i32
    return %c0_i32, %c0_i32_0 : i32, i32
  }
  func.func @transform_3(%arg0: i32, %arg1: i32) -> (i32, i32, i32) {
    %c0_i32 = arith.constant 0 : i32
    %c0_i32_0 = arith.constant 0 : i32
    return %arg0, %c0_i32, %arg1 : i32, i32, i32
  }
}

</mosaic_0001>

<llo_original>
// kernel: classifier_end.1
$region0: #{classifier_end.1}
  #allocation0 [shape = 'u32[]', space=smem, size = 0x4, offset = 0x4, fixed_abs, tag = 'smem constant byte address 0x4 - core index']
  #allocation1 [shape = 'u32[144,128]{1,0:T(1,128)}', space=vmem, size = 0x12000, scoped, tag = 'internal scratch']
  %s0 = inlined_call_operand.vmem [shape: f32[2,21,256], index: 0, kind: input, shape index: {}]
  %s1 = inlined_call_operand.vmem [shape: f32[4,21], index: 1, kind: input, shape index: {}]
  %s2 = inlined_call_operand.vmem [shape: f32[4,1], index: 2, kind: input, shape index: {}]
  %s3 = inlined_call_operand.vmem [shape: f32[2,4,256], index: 3, kind: output, shape index: {}]
  %s4 = sld [smem:[#allocation0]]
  $region45: #{classifier_end.1} parent=0
    _
  %s6 = ssub.s32 1, %s4
  %s7 = scalar_select 0, %s6, %s4
  loop: start=0, step=1, limit=4
  $region2: #{classifier_end.1} parent=0 // loop_pre_header
    _
  $region3: #{classifier_end.1} parent=0 // loop_header
    %s9 = sphi 0, %s13
    %p10 = scmp.ge.s32.totalorder %s9, 4
    %s16 = sphi 0, %s28
    %s17 = sphi 0, %s24
    %s18 = sphi 0, %s16
    %s19 = sphi 0, %s17
    %s20 = sphi 0, %s18
    %s21 = sphi 0, %s19
    %s33 = sphi 0, %s35
    %s36 = sphi 0, %s33
    %s37 = sphi 0, %s36
    %s53 = sphi 0, %s37
    %s57 = sphi 0, %s57
    %s59 = sphi 0, %s57
    %s60 = sphi 0, %s59
    %s74 = sphi 0, %s60
    %s78 = sphi 0, %s78
    %s80 = sphi 0, %s78
    %s81 = sphi 0, %s80
    %s95 = sphi 0, %s81
    %s103 = sphi 0, %s105
    %s106 = sphi 0, %s103
    %s107 = sphi 0, %s106
    %s123 = sphi 0, %s107
  $region4: #{classifier_end.1} parent=0 // loop_header_branch
    %12 = sbr.rel (%p10) target = $region8
  $region5: #{classifier_end.1} parent=0 // loop_body
    %s14 = ssub.s32 %s9, 1
    %s15 = ssub.s32 %s9, 2
    %s22 = sadd.s32 1, %s17
    %p23 = scmp.ge.s32.totalorder %s22, 1
    %s24 = scalar_select %p23, 0, %s22
    %s25 = sadd.s32 1, %s16
    %s26 = scalar_select %p23, %s25, %s16
    %p27 = scmp.ge.s32.totalorder %s26, 2
    %s28 = scalar_select %p27, 0, %s26
    %s29 = ssub.s32 %s16, %s28
    %s30 = ssub.s32 %s17, %s24
    %s31 = sor.u32 %s29, %s30
    %p32 = scmp.eq.s32.totalorder %s31, 0
    %s34 = sadd.s32 %s33, 1
    %s35 = scalar_select %p32, %s33, %s34
    %p38 = pneg %p32
    %p39 = scmp.eq.s32.totalorder %s9, 1
    %p40 = por %p38, %p39
    %p41 = scmp.ne.s32.totalorder %s33, %s36
    %p42 = scmp.eq.s32.totalorder %s9, 0
    %p43 = por %p41, %p42
    %p44 = scmp.ne.s32.totalorder %s33, %s36
    %p45 = scmp.eq.s32.totalorder %s14, 1
    %p46 = por %p44, %p45
    %p47 = scmp.ne.s32.totalorder %s36, %s37
    %p48 = scmp.eq.s32.totalorder %s14, 0
    %p49 = por %p47, %p48
    %p50 = scmp.ne.s32.totalorder %s36, %s37
    %p51 = scmp.eq.s32.totalorder %s15, 1
    %p52 = por %p50, %p51
    %p54 = scmp.ne.s32.totalorder %s37, %s53
    %p55 = scmp.eq.s32.totalorder %s15, 0
    %p56 = por %p54, %p55
    %s58 = sadd.s32 %s57, 1
    %p61 = scmp.eq.s32.totalorder %s9, 1
    %p62 = scmp.ne.s32.totalorder %s57, %s59
    %p63 = scmp.eq.s32.totalorder %s9, 0
    %p64 = por %p62, %p63
    %p65 = scmp.ne.s32.totalorder %s57, %s59
    %p66 = scmp.eq.s32.totalorder %s14, 1
    %p67 = por %p65, %p66
    %p68 = scmp.ne.s32.totalorder %s59, %s60
    %p69 = scmp.eq.s32.totalorder %s14, 0
    %p70 = por %p68, %p69
    %p71 = scmp.ne.s32.totalorder %s59, %s60
    %p72 = scmp.eq.s32.totalorder %s15, 1
    %p73 = por %p71, %p72
    %p75 = scmp.ne.s32.totalorder %s60, %s74
    %p76 = scmp.eq.s32.totalorder %s15, 0
    %p77 = por %p75, %p76
    %s79 = sadd.s32 %s78, 1
    %p82 = scmp.eq.s32.totalorder %s9, 1
    %p83 = scmp.ne.s32.totalorder %s78, %s80
    %p84 = scmp.eq.s32.totalorder %s9, 0
    %p85 = por %p83, %p84
    %p86 = scmp.ne.s32.totalorder %s78, %s80
    %p87 = scmp.eq.s32.totalorder %s14, 1
    %p88 = por %p86, %p87
    %p89 = scmp.ne.s32.totalorder %s80, %s81
    %p90 = scmp.eq.s32.totalorder %s14, 0
    %p91 = por %p89, %p90
    %p92 = scmp.ne.s32.totalorder %s80, %s81
    %p93 = scmp.eq.s32.totalorder %s15, 1
    %p94 = por %p92, %p93
    %p96 = scmp.ne.s32.totalorder %s81, %s95
    %p97 = scmp.eq.s32.totalorder %s15, 0
    %p98 = por %p96, %p97
    %s99 = ssub.s32 %s16, %s28
    %s100 = ssub.s32 %s17, %s24
    %s101 = sor.u32 %s99, %s100
    %p102 = scmp.eq.s32.totalorder %s101, 0
    %s104 = sadd.s32 %s103, 1
    %s105 = scalar_select %p102, %s103, %s104
    %p108 = pneg %p102
    %p109 = scmp.eq.s32.totalorder %s9, 1
    %p110 = por %p108, %p109
    %p111 = scmp.ne.s32.totalorder %s103, %s106
    %p112 = scmp.eq.s32.totalorder %s9, 0
    %p113 = por %p111, %p112
    %p114 = scmp.ne.s32.totalorder %s103, %s106
    %p115 = scmp.eq.s32.totalorder %s14, 1
    %p116 = por %p114, %p115
    %p117 = scmp.ne.s32.totalorder %s106, %s107
    %p118 = scmp.eq.s32.totalorder %s14, 0
    %p119 = por %p117, %p118
    %p120 = scmp.ne.s32.totalorder %s106, %s107
    %p121 = scmp.eq.s32.totalorder %s15, 1
    %p122 = por %p120, %p121
    %p124 = scmp.ne.s32.totalorder %s107, %s123
    %p125 = scmp.eq.s32.totalorder %s15, 0
    %p126 = por %p124, %p125
    %p127 = scmp.le.s32.totalorder 1, %s9
    %p128 = scmp.lt.s32.totalorder %s9, 3
    %p129 = pnand %p127, %p128
    %p130 = pneg %p129
    // Predicated region
    $region9: #{classifier_end.1} parent=5 // pred_check
      _
    $region10: #{classifier_end.1} parent=5 // pred_check_branch
      %132 = sbr.rel (%p129) target = $region12
    $region11: #{classifier_end.1} parent=5 // pred_region
      %s133 = ssub.s32 %s9, 1
      // Predicated region
      $region13: #{classifier_end.1} parent=11 // pred_check
        %p134 = pneg %p70
      $region14: #{classifier_end.1} parent=11 // pred_check_branch
        %136 = sbr.rel (%p134) target = $region16
      $region15: #{classifier_end.1} parent=11 // pred_region
        _
      $region16: #{classifier_end.1} parent=11 // pred_fallthru
        _
      // Predicated region
      $region17: #{classifier_end.1} parent=11 // pred_check
        %p137 = pneg %p91
      $region18: #{classifier_end.1} parent=11 // pred_check_branch
        %139 = sbr.rel (%p137) target = $region20
      $region19: #{classifier_end.1} parent=11 // pred_region
        _
      $region20: #{classifier_end.1} parent=11 // pred_fallthru
        _
    $region12: #{classifier_end.1} parent=5 // pred_fallthru
      _
    %p140 = scmp.lt.s32.totalorder %s9, 2
    // Predicated region
    $region21: #{classifier_end.1} parent=5 // pred_check
      %p141 = pneg %p140
    $region22: #{classifier_end.1} parent=5 // pred_check_branch
      %143 = sbr.rel (%p141) target = $region24
    $region23: #{classifier_end.1} parent=5 // pred_region
      // Predicated region
      $region25: #{classifier_end.1} parent=23 // pred_check
        %p144 = pneg %p43
      $region26: #{classifier_end.1} parent=23 // pred_check_branch
        %146 = sbr.rel (%p144) target = $region28
      $region27: #{classifier_end.1} parent=23 // pred_region
        %s147 = smul.u32 2, %s17
        %p148 = scmp.lt.s32.totalorder %s16, 1
        %s149 = scalar_select %p148, %s16, 1
        %p150 = scmp.lt.s32.totalorder %s147, 1
        %s151 = scalar_select %p150, %s147, 1
        %s152 = smul.addr %s149, 6
        %s153 = sadd.s32 %s151, %s152
        %s154 = smul.addr %s153, 8
        %s155 = scalar_lea.vmem %s0, %s154
        %s156 = smul.u32 2, %s17
      $region28: #{classifier_end.1} parent=23 // pred_fallthru
        _
    $region24: #{classifier_end.1} parent=5 // pred_fallthru
      _
    %p157 = scmp.le.s32.totalorder 1, %s9
    %p158 = scmp.lt.s32.totalorder %s9, 3
    %p159 = pnand %p157, %p158
    %p160 = pneg %p159
    // Predicated region
    $region29: #{classifier_end.1} parent=5 // pred_check
      _
    $region30: #{classifier_end.1} parent=5 // pred_check_branch
      %162 = sbr.rel (%p159) target = $region32
    $region31: #{classifier_end.1} parent=5 // pred_region
      %s163 = ssub.s32 %s9, 1
      %s164 = smul.u32 2, %s19
      %p165 = scmp.lt.s32.totalorder %s18, 1
      %s166 = scalar_select %p165, %s18, 1
      %p167 = scmp.lt.s32.totalorder %s164, 1
      %s168 = scalar_select %p167, %s164, 1
      %s169 = smul.addr %s166, 6
      %s170 = sadd.s32 %s168, %s169
      %s171 = smul.addr %s170, 8
      %s172 = scalar_lea.vmem %s0, %s171
      %p173 = pneg %p49
      %p174 = pneg %p46
      %p175 = pneg %p70
      %p176 = pneg %p67
      %p177 = pneg %p91
      %p178 = pneg %p88
      %p179 = pneg %p119
      %p180 = pneg %p116
      %s181 = smul.u32 2, %s19
      %p182 = scmp.lt.s32.totalorder %s18, 1
      %s183 = scalar_select %p182, %s18, 1
      %p184 = scmp.lt.s32.totalorder %s181, 1
      %s185 = scalar_select %p184, %s181, 1
      %s186 = smul.addr %s183, 2
      %s187 = sadd.s32 %s185, %s186
      %s188 = smul.addr %s187, 4
      %s189 = scalar_lea.vmem %s3, %s188
      %s190 = smul.u32 2, %s19
      %p191 = scmp.lt.s32.totalorder %s18, 1
      %s192 = scalar_select %p191, %s18, 1
      %p193 = scmp.lt.s32.totalorder %s190, 1
      %s194 = scalar_select %p193, %s190, 1
      %s195 = smul.addr %s192, 6
      %s196 = sadd.s32 %s194, %s195
      %s197 = smul.addr %s196, 8
      %s198 = scalar_lea.vmem %s0, %s197
      %s199 = smul.u32 2, %s19
      %s200 = smul.u32 2, %s19
      %p201 = scmp.lt.s32.totalorder %s18, 1
      %s202 = scalar_select %p201, %s18, 1
      %p203 = scmp.lt.s32.totalorder %s200, 1
      %s204 = scalar_select %p203, %s200, 1
      %s205 = smul.addr %s202, 2
      %s206 = sadd.s32 %s204, %s205
      %s207 = smul.addr %s206, 4
      %s208 = scalar_lea.vmem %s3, %s207
      %s209 = smul.u32 2, %s19
      %v210 = vld [vmem:[%s198] sm:$0xff]
      %v211 = vld [vmem:[%s198 + $0x8] sm:$0xff]
      %v212 = vld [vmem:[%s198 + $0x10] sm:$0xff]
      %v213 = vld [vmem:[%s198 + $0x18] sm:$0xff]
      %v214 = vld [vmem:[%s198 + $0x20] sm:$0x1f]
      %v215 = vld [vmem:[%s198 + $0x28] sm:$0x1f]
      %v216 = vld [vmem:[%s1] sm:$0xf]
      %v217 = vld [vmem:[%s2] sm:$0xf]
      %219 = vset.pattern.permute.xlu0 0
      %220 = vperm.xlu0 %219, %v217
      %v221 = vpop.permute.xlu0 %220
      %vm223 = vcmask 171008
      %v225 = vsel %vm223, %v216, 0
      %vm227 = vcmask 1044480
      %v229 = vsel %vm227, %v214, 0
      %v232 = vsel %vm227, %v215, 0
      %234 = vmatprep.subr.mxu0 0.0
      %235 = vmatpush1.msra.mxu0 0.0
      %236 = vmatprep.subr.mxu0 0.0
      %237 = vmatpush1.msra.mxu0 0.0
      %238 = vmatprep.subr.mxu0 0.0
      %239 = vmatpush1.msra.mxu0 0.0
      %240 = vmatprep.subr.mxu0 0.0
      %241 = vmatpush1.msra.mxu0 0.0
      %242 = vmatprep.subr.mxu0 0.0
      %243 = vmatpush1.msra.mxu0 0.0
      %244 = vmatprep.subr.mxu0 0.0
      %245 = vmatpush1.msra.mxu0 0.0
      %246 = vmatprep.subr.mxu0 0.0
      %247 = vmatpush1.msra.mxu0 0.0
      %248 = vmatprep.subr.mxu0 0.0
      %249 = vmatpush1.msra.mxu0 0.0
      %250 = vmatprep.subr.mxu0 0.0
      %251 = vmatpush1.msra.mxu0 0.0
      %252 = vmatprep.subr.mxu0 0.0
      %253 = vmatpush1.msra.mxu0 0.0
      %254 = vmatprep.subr.mxu0 0.0
      %255 = vmatpush1.msra.mxu0 0.0
      %256 = vmatprep.subr.mxu0 0.0
      %257 = vmatpush1.msra.mxu0 0.0
      %258 = vmatprep.subr.mxu0 0.0
      %259 = vmatpush1.msra.mxu0 0.0
      %260 = vmatprep.subr.mxu0 %v232
      %261 = vmatpush1.msra.mxu0 %v229
      %262 = vmatprep.subr.mxu0 %v213
      %263 = vmatpush1.msra.mxu0 %v212
      %264 = vmatprep.subr.mxu0 %v211
      %265 = vmatpush1.msra.mxu0 %v210
      %266 = vmatprep.subr.mxu0 0.0
      %267 = vmatpush2.msra.mxu0 0.0
      %268 = vmatprep.subr.mxu0 0.0
      %269 = vmatpush2.msra.mxu0 0.0
      %270 = vmatprep.subr.mxu0 0.0
      %271 = vmatpush2.msra.mxu0 0.0
      %272 = vmatprep.subr.mxu0 0.0
      %273 = vmatpush2.msra.mxu0 0.0
      %274 = vmatprep.subr.mxu0 0.0
      %275 = vmatpush2.msra.mxu0 0.0
      %276 = vmatprep.subr.mxu0 0.0
      %277 = vmatpush2.msra.mxu0 0.0
      %278 = vmatprep.subr.mxu0 0.0
      %279 = vmatpush2.msra.mxu0 0.0
      %280 = vmatprep.subr.mxu0 0.0
      %281 = vmatpush2.msra.mxu0 0.0
      %282 = vmatprep.subr.mxu0 0.0
      %283 = vmatpush2.msra.mxu0 0.0
      %284 = vmatprep.subr.mxu0 0.0
      %285 = vmatpush2.msra.mxu0 0.0
      %286 = vmatprep.subr.mxu0 0.0
      %287 = vmatpush2.msra.mxu0 0.0
      %288 = vmatprep.subr.mxu0 0.0
      %289 = vmatpush2.msra.mxu0 0.0
      %290 = vmatprep.subr.mxu0 0.0
      %291 = vmatpush2.msra.mxu0 0.0
      %292 = vmatprep.subr.mxu0 0.0
      %293 = vmatpush2.msra.mxu0 0.0
      %294 = vmatprep.subr.mxu0 0.0
      %295 = vmatpush2.msra.mxu0 0.0
      %296 = vmatprep.subr.mxu0 0.0
      %297 = vmatpush2.msra.mxu0 0.0
      %298 = vmatprep.mubr.f32.mxu0 0.0
      %299 = vmatmul.mubr.f32.gmra.mxu0 %v225
      %v300 = vpop.f32.mrf.mxu0
      %v301 = vadd.f32 %v221, %v300
      %v302 = vpop.f32.mrf.mxu0
      %v303 = vadd.f32 %v221, %v302
      %304 = vdwg.mxu0
      %vm305 = vcmask 1043456
      %v306 = vsel %vm305, %v301, -inf
      %v307 = vrot.slane %v306, 4
      %v308 = vmax.f32 %v306, %v307
      %v309 = vrot.slane %v308, 2
      %v310 = vmax.f32 %v308, %v309
      %v311 = vrot.slane %v310, 1
      %v312 = vmax.f32 %v310, %v311
      %v313 = vsel %vm305, %v303, -inf
      %v314 = vrot.slane %v313, 4
      %v315 = vmax.f32 %v313, %v314
      %v316 = vrot.slane %v315, 2
      %v317 = vmax.f32 %v315, %v316
      %v318 = vrot.slane %v317, 1
      %v319 = vmax.f32 %v317, %v318
      %v320 = vsub.f32 %v301, %v312
      %v321 = vsub.f32 %v303, %v319
      %v322 = vmul.f32 %v320, 1.442695
      %v323 = vpow.pop %v322
      %v324 = vmul.f32 %v321, 1.442695
      %v325 = vpow.pop %v324
      %v326 = vsel %vm305, %v323, 0.0
      %v327 = vrot.slane %v326, 4
      %v328 = vadd.f32 %v326, %v327
      %v329 = vrot.slane %v328, 2
      %v330 = vadd.f32 %v328, %v329
      %v331 = vrot.slane %v330, 1
      %v332 = vadd.f32 %v330, %v331
      %v333 = vsel %vm305, %v325, 0.0
      %v334 = vrot.slane %v333, 4
      %v335 = vadd.f32 %v333, %v334
      %v336 = vrot.slane %v335, 2
      %v337 = vadd.f32 %v335, %v336
      %v338 = vrot.slane %v337, 1
      %v339 = vadd.f32 %v337, %v338
      %v340 = vrcp.pop %v332
      %v341 = vmul.f32 %v323, %v340
      %v342 = vrcp.pop %v339
      %v343 = vmul.f32 %v325, %v342
      %v346 = vcombine.low %v341, %v343
      %348 = vst [vmem:[%s208] sm:$0xff] %v346
      %s349 = smul.u32 2, %s19
      %p350 = scmp.lt.s32.totalorder %s18, 1
      %s351 = scalar_select %p350, %s18, 1
      %p352 = scmp.lt.s32.totalorder %s349, 1
      %s353 = scalar_select %p352, %s349, 1
      %s354 = smul.addr %s351, 2
      %s355 = sadd.s32 %s353, %s354
      %s356 = smul.addr %s355, 4
      %s357 = scalar_lea.vmem %s3, %s356
      // Predicated region
      $region33: #{classifier_end.1} parent=31 // pred_check
        %p358 = pneg %p116
      $region34: #{classifier_end.1} parent=31 // pred_check_branch
        %360 = sbr.rel (%p358) target = $region36
      $region35: #{classifier_end.1} parent=31 // pred_region
        %s361 = smul.u32 2, %s19
      $region36: #{classifier_end.1} parent=31 // pred_fallthru
        _
    $region32: #{classifier_end.1} parent=5 // pred_fallthru
      _
    %p362 = scmp.le.s32.totalorder 2, %s9
    // Predicated region
    $region37: #{classifier_end.1} parent=5 // pred_check
      %p363 = pneg %p362
    $region38: #{classifier_end.1} parent=5 // pred_check_branch
      %365 = sbr.rel (%p363) target = $region40
    $region39: #{classifier_end.1} parent=5 // pred_region
      %s366 = ssub.s32 %s9, 2
      // Predicated region
      $region41: #{classifier_end.1} parent=39 // pred_check
        %p367 = pneg %p122
      $region42: #{classifier_end.1} parent=39 // pred_check_branch
        %369 = sbr.rel (%p367) target = $region44
      $region43: #{classifier_end.1} parent=39 // pred_region
        %s370 = smul.u32 2, %s21
        %p371 = scmp.lt.s32.totalorder %s20, 1
        %s372 = scalar_select %p371, %s20, 1
        %p373 = scmp.lt.s32.totalorder %s370, 1
        %s374 = scalar_select %p373, %s370, 1
        %s375 = smul.addr %s372, 2
        %s376 = sadd.s32 %s374, %s375
        %s377 = smul.addr %s376, 4
        %s378 = scalar_lea.vmem %s3, %s377
      $region44: #{classifier_end.1} parent=39 // pred_fallthru
        _
    $region40: #{classifier_end.1} parent=5 // pred_fallthru
      _
  $region6: #{classifier_end.1} parent=0 // loop_footer
    %s13 = sadd.s32 1, %s9
  $region7: #{classifier_end.1} parent=0 // loop_footer_branch
    %8 = sbr.rel target = $region3
  $region8: #{classifier_end.1} parent=0 // loop_exit
    _

</llo_original>
